<compile_context>
chip_gen: v7x
topology: tpu7x:2x2x1
jax: 0.10.0
libtpu: 0.0.40
codegen_flags: <defaults>
</compile_context>

<pallas_src>
import jax
import jax.numpy as jnp
import numpy as np
from jax import lax
from jax.experimental import pallas as pl
from jax.experimental.pallas import tpu as pltpu

IN_DIM = 4
HID_DIM = 36
OUT_DIM = 1
LANE = 128          # vreg lane width
TB_MAX = 32768      # max batch-tile width (lanes) per grid step


def _mlp_kernel(x_ref, w1_ref, b1_ref, w2_ref, b2_ref, o_ref):
    # x_ref:  (IN_DIM, TB)       VMEM
    # w1_ref: (HID_DIM, IN_DIM)  VMEM    b1_ref: (HID_DIM, 1) VMEM
    # w2_ref: (OUT_DIM, HID_DIM) VMEM    b2_ref: (1,) SMEM scalar
    # o_ref:  (OUT_DIM, TB)      VMEM
    # fc1 on the MXU: (36,4) @ (4,TB) -> (36,TB).
    h = jnp.dot(w1_ref[...], x_ref[...],
                preferred_element_type=jnp.float32,
                precision=lax.Precision.HIGHEST)
    t = jnp.tanh(h + b1_ref[...])          # EUP transcendental
    # TODO(synk): if a bundle dump shows the EUP binding after the MXU offload,
    # swap tanh for exp + pl.reciprocal(approx=True) (tanh(x)=1-2/(exp(2x)+1)).
    # critic head on the MXU: (1,36) @ (36,TB) -> (1,TB); bias added as an
    # SMEM scalar so no (1,1) VMEM tile / lane-broadcast is needed.
    o_ref[...] = jnp.dot(w2_ref[...], t,
                         preferred_element_type=jnp.float32,
                         precision=lax.Precision.HIGHEST) + b2_ref[0]


def _select_tiling(batch):
    """Returns (padded_batch, tile_width).  Lane-multiple tiles, >= 2 tiles
    whenever batch >= 2*LANE (v7x megacore sharding), padding waste bounded by
    max(LANE, pB//8) so huge tiles never compute mostly-garbage columns."""
    pB = -(-batch // LANE) * LANE
    if pB <= LANE:
        return pB, pB
    tb = max(min(TB_MAX, (pB // 2) // LANE * LANE), LANE)
    while tb > LANE:
        if (-pB) % tb <= max(LANE, pB // 8):
            break
        tb = max((tb // 2) // LANE * LANE, LANE)
    padded = -(-pB // tb) * tb
    return padded, tb


def aa_forward(x, w1, b1, w2, b2):
    """x: (B, 4) f32.  Torch-layout params: w1 (36,4), b1 (36,), w2 (1,36),
    b2 (1,).  Returns (B, 1) f32 critic values."""
    B = x.shape[0]
    pB, tb = _select_tiling(B)

    # Batch-on-lanes layout: jnp.pad(x.T, ...) lets XLA emit a single fused
    # transpose+pad pass.  Producers that already hold x as (4, B) can feed it
    # straight in and skip this.
    xt = jnp.pad(x.T.astype(jnp.float32), ((0, 0), (0, pB - B)))
    w1_k = w1.astype(jnp.float32)                              # (36, 4)
    b1_k = b1.reshape(HID_DIM, 1).astype(jnp.float32)          # (36, 1)
    w2_k = w2.reshape(OUT_DIM, HID_DIM).astype(jnp.float32)    # (1, 36)
    b2_k = b2.reshape(OUT_DIM).astype(jnp.float32)             # (1,) scalar

    out_t = pl.pallas_call(
        _mlp_kernel,
        out_shape=jax.ShapeDtypeStruct((OUT_DIM, pB), jnp.float32),
        grid=(pB // tb,),
        in_specs=[
            pl.BlockSpec((IN_DIM, tb), lambda i: (0, i)),         # x tile over B
            pl.BlockSpec((HID_DIM, IN_DIM), lambda i: (0, 0)),    # w1 resident
            pl.BlockSpec((HID_DIM, 1), lambda i: (0, 0)),         # b1 resident
            pl.BlockSpec((OUT_DIM, HID_DIM), lambda i: (0, 0)),   # w2 resident
            pl.BlockSpec(memory_space=pltpu.MemorySpace.SMEM),    # b2 scalar
        ],
        out_specs=pl.BlockSpec((OUT_DIM, tb), lambda i: (0, i)),
        compiler_params=pltpu.CompilerParams(
            dimension_semantics=("parallel",),
            vmem_limit_bytes=48 * 1024 * 1024),   # headroom for 32K-wide tiles
    )(xt, w1_k, b1_k, w2_k, b2_k)

    return out_t[:, :B].T                                         # (B, 1)


def xavier_uniform(key, fan_out, fan_in):
    # matches torch.nn.init.xavier_uniform_ (gain=1) on a (fan_out, fan_in) weight
    limit = np.sqrt(6.0 / (fan_in + fan_out))
    return jax.random.uniform(key, (fan_out, fan_in),
                              minval=-limit, maxval=limit, dtype=jnp.float32)


def init_params(key):
    k1, k2, k3, k4 = jax.random.split(key, 4)
    # fc1: Linear(4, 36) -> weight (36, 4), bias (36,)
    w1 = xavier_uniform(k1, HID_DIM, IN_DIM)
    bound1 = 1.0 / np.sqrt(IN_DIM)
    b1 = jax.random.uniform(k2, (HID_DIM,), minval=-bound1, maxval=bound1,
                            dtype=jnp.float32)
    # critic: Linear(36, 1) -> weight (1, 36), bias (1,)
    w2 = xavier_uniform(k3, OUT_DIM, HID_DIM)
    bound2 = 1.0 / np.sqrt(HID_DIM)
    b2 = jax.random.uniform(k4, (OUT_DIM,), minval=-bound2, maxval=bound2,
                            dtype=jnp.float32)
    return w1, b1, w2, b2


if __name__ == "__main__":
    key = jax.random.PRNGKey(0)
    kx, kp = jax.random.split(key)
    B = 8
    x = jax.random.normal(kx, (B, IN_DIM), dtype=jnp.float32)
    w1, b1, w2, b2 = init_params(kp)

    out = jax.block_until_ready(aa_forward(x, w1, b1, w2, b2))

    # pure-JAX reference (PyTorch semantics: y = critic(tanh(fc1(x))))
    ref = jnp.tanh(x @ w1.T + b1) @ w2.T + b2
    np.testing.assert_allclose(np.asarray(out), np.asarray(ref),
                               rtol=1e-5, atol=1e-5)
    assert out.shape == (B, OUT_DIM)
    print("KERNEL_OK")
</pallas_src>

<mosaic_0001>
module attributes {stable_mosaic.version = 11 : i64} {
  func.func @_mlp_kernel(%arg0: i32, %arg1: memref<4x128xf32, #tpu.memory_space<vmem>>, %arg2: memref<36x4xf32, #tpu.memory_space<vmem>>, %arg3: memref<36x1xf32, #tpu.memory_space<vmem>>, %arg4: memref<1x36xf32, #tpu.memory_space<vmem>>, %arg5: memref<1xf32, #tpu.memory_space<smem>>, %arg6: memref<1x128xf32, #tpu.memory_space<vmem>>) attributes {dimension_semantics = [#tpu.dimension_semantics<parallel>], iteration_bounds = array<i64: 1>, scalar_prefetch = 0 : i64, scratch_operands = 0 : i64, tpu.core_type = #tpu.core_type<tc>, window_params = [{transform_indices = @transform_0, window_bounds = array<i64: 4, 128>}, {pipeline_mode = #tpu.pipeline_mode<synchronous>, transform_indices = @transform_1, window_bounds = array<i64: 36, 4>}, {pipeline_mode = #tpu.pipeline_mode<synchronous>, transform_indices = @transform_2, window_bounds = array<i64: 36, 1>}, {pipeline_mode = #tpu.pipeline_mode<synchronous>, transform_indices = @transform_3, window_bounds = array<i64: 1, 36>}, {transform_indices = @transform_4, window_bounds = array<i64: 1>}, {transform_indices = @transform_5, window_bounds = array<i64: 1, 128>}]} {
    %c0 = arith.constant 0 : index
    %c0_0 = arith.constant 0 : index
    %0 = vector.load %arg2[%c0, %c0_0] : memref<36x4xf32, #tpu.memory_space<vmem>>, vector<36x4xf32>
    %c0_1 = arith.constant 0 : index
    %c0_2 = arith.constant 0 : index
    %1 = vector.load %arg1[%c0_1, %c0_2] : memref<4x128xf32, #tpu.memory_space<vmem>>, vector<4x128xf32>
    %cst = arith.constant dense<0.000000e+00> : vector<36x128xf32>
    %2 = tpu.matmul %0, %1, %cst {dimension_numbers = #tpu.dot_dimension_numbers<[1], [0], [0], [1], [0, 0, 1, 1], [], []>, precision = #tpu.contract_precision<fp32>} : vector<36x4xf32>, vector<4x128xf32>, vector<36x128xf32> -> vector<36x128xf32>
    %c0_3 = arith.constant 0 : index
    %c0_4 = arith.constant 0 : index
    %3 = vector.load %arg3[%c0_3, %c0_4] : memref<36x1xf32, #tpu.memory_space<vmem>>, vector<36x1xf32>
    %4 = vector.broadcast %3 : vector<36x1xf32> to vector<36x128xf32>
    %5 = arith.addf %2, %4 : vector<36x128xf32>
    %6 = math.tanh %5 : vector<36x128xf32>
    %c0_5 = arith.constant 0 : index
    %c0_6 = arith.constant 0 : index
    %7 = vector.load %arg4[%c0_5, %c0_6] : memref<1x36xf32, #tpu.memory_space<vmem>>, vector<1x36xf32>
    %cst_7 = arith.constant dense<0.000000e+00> : vector<1x128xf32>
    %8 = tpu.matmul %7, %6, %cst_7 {dimension_numbers = #tpu.dot_dimension_numbers<[1], [0], [0], [1], [0, 0, 1, 1], [], []>, precision = #tpu.contract_precision<fp32>} : vector<1x36xf32>, vector<36x128xf32>, vector<1x128xf32> -> vector<1x128xf32>
    %c0_8 = arith.constant 0 : index
    %9 = memref.load %arg5[%c0_8] : memref<1xf32, #tpu.memory_space<smem>>
    %10 = vector.broadcast %9 : f32 to vector<1x128xf32>
    %11 = arith.addf %8, %10 : vector<1x128xf32>
    %c0_9 = arith.constant 0 : index
    %c0_10 = arith.constant 0 : index
    %12 = vector.load %arg6[%c0_9, %c0_10] : memref<1x128xf32, #tpu.memory_space<vmem>>, vector<1x128xf32>
    tpu.vector_store %arg6[%c0_9, %c0_10], %11 {strides = array<i32>} : memref<1x128xf32, #tpu.memory_space<vmem>>, vector<1x128xf32>,
    return
  }
  func.func @transform_0(%arg0: i32) -> (i32, i32) {
    %c0_i32 = arith.constant 0 : i32
    %c0_i32_0 = arith.constant 0 : i32
    return %c0_i32, %arg0 : i32, i32
  }
  func.func @transform_1(%arg0: i32) -> (i32, i32) {
    %c0_i32 = arith.constant 0 : i32
    %c0_i32_0 = arith.constant 0 : i32
    %c0_i32_1 = arith.constant 0 : i32
    return %c0_i32, %c0_i32_0 : i32, i32
  }
  func.func @transform_2(%arg0: i32) -> (i32, i32) {
    %c0_i32 = arith.constant 0 : i32
    %c0_i32_0 = arith.constant 0 : i32
    %c0_i32_1 = arith.constant 0 : i32
    return %c0_i32, %c0_i32_0 : i32, i32
  }
  func.func @transform_3(%arg0: i32) -> (i32, i32) {
    %c0_i32 = arith.constant 0 : i32
    %c0_i32_0 = arith.constant 0 : i32
    %c0_i32_1 = arith.constant 0 : i32
    return %c0_i32, %c0_i32_0 : i32, i32
  }
  func.func @transform_4(%arg0: i32) -> i32 {
    %c0_i32 = arith.constant 0 : i32
    %c0_i32_0 = arith.constant 0 : i32
    return %c0_i32 : i32
  }
  func.func @transform_5(%arg0: i32) -> (i32, i32) {
    %c0_i32 = arith.constant 0 : i32
    %c0_i32_0 = arith.constant 0 : i32
    return %c0_i32, %arg0 : i32, i32
  }
}

</mosaic_0001>

<llo_original>
// kernel: tpu_custom_call.1
$region0: #{tpu_custom_call.1}
  #allocation0 [shape = 'u32[]', space=smem, size = 0x4, offset = 0x4, fixed_abs, tag = 'smem constant byte address 0x4 - core index']
  #allocation1 [shape = 'u32[144,128]{1,0:T(1,128)}', space=vmem, size = 0x12000, scoped, tag = 'internal scratch']
  #allocation2 [shape = 'f32[1]{0:T(128)S(6)}', space=smem, size = 0x200, scoped, tag = 'scoped memory for tpu_custom_call.1']
  %s0 = inlined_call_operand.vmem [shape: f32[4,128], index: 0, kind: input, shape index: {}]
  %s1 = inlined_call_operand.vmem [shape: f32[36,4], index: 1, kind: input, shape index: {}]
  %s2 = inlined_call_operand.vmem [shape: f32[36,1], index: 2, kind: input, shape index: {}]
  %s3 = inlined_call_operand.vmem [shape: f32[1,36], index: 3, kind: input, shape index: {}]
  %s4 = inlined_call_operand.<no memory space> [shape: f32[1], index: 4, kind: input, shape index: {}]
  %s5 = inlined_call_operand.hbm [shape: f32[1,128], index: 5, kind: output, shape index: {}]
  %s6 = sld [smem:[#allocation0]]
  $region30: #{tpu_custom_call.1} parent=0
    _
  %s8 = ssub.s32 1, %s6
  %s9 = scalar_select 0, %s8, %s6
  %10 = sst [smem:[#allocation2]] %s4
  $region1: #{tpu_custom_call.1} parent=0
    #allocation3 [shape = 'u8[512]{0}', space=vmem, size = 0x400, scoped, tag = 'output window, operand 0, single buffered']
    #allocation4 [shape = 's32[1]{0}', space=sflag, size = 0x4, scoped, tag = 'scoped memory for tpu_custom_call.1']
    %11 = vsyncpa [#allocation4], 0
    // Predicated region
    $region2: #{tpu_custom_call.1} parent=1 // pred_check
      _
    $region3: #{tpu_custom_call.1} parent=1 // pred_check_branch
      %13 = sbr.rel (0) target = $region5
    $region4: #{tpu_custom_call.1} parent=1 // pred_region
      _
    $region5: #{tpu_custom_call.1} parent=1 // pred_fallthru
      _
    // Predicated region
    $region6: #{tpu_custom_call.1} parent=1 // pred_check
      _
    $region7: #{tpu_custom_call.1} parent=1 // pred_check_branch
      %15 = sbr.rel (0) target = $region9
    $region8: #{tpu_custom_call.1} parent=1 // pred_region
      _
    $region9: #{tpu_custom_call.1} parent=1 // pred_fallthru
      _
    // Predicated region
    $region10: #{tpu_custom_call.1} parent=1 // pred_check
      _
    $region11: #{tpu_custom_call.1} parent=1 // pred_check_branch
      %17 = sbr.rel (0) target = $region13
    $region12: #{tpu_custom_call.1} parent=1 // pred_region
      _
    $region13: #{tpu_custom_call.1} parent=1 // pred_fallthru
      _
    // Predicated region
    $region14: #{tpu_custom_call.1} parent=1 // pred_check
      _
    $region15: #{tpu_custom_call.1} parent=1 // pred_check_branch
      %19 = sbr.rel (0) target = $region17
    $region16: #{tpu_custom_call.1} parent=1 // pred_region
      _
    $region17: #{tpu_custom_call.1} parent=1 // pred_fallthru
      _
    // Predicated region
    $region18: #{tpu_custom_call.1} parent=1 // pred_check
      _
    $region19: #{tpu_custom_call.1} parent=1 // pred_check_branch
      %21 = sbr.rel (0) target = $region21
    $region20: #{tpu_custom_call.1} parent=1 // pred_region
      _
    $region21: #{tpu_custom_call.1} parent=1 // pred_fallthru
      _
    %v22 = vld [vmem:[%s1] sm:$0xff]
    %v23 = vld [vmem:[%s1 + $0x8] sm:$0xff]
    %v24 = vld [vmem:[%s1 + $0x10] sm:$0xff]
    %v25 = vld [vmem:[%s1 + $0x18] sm:$0xff]
    %v26 = vld [vmem:[%s1 + $0x20] sm:$0xf]
    %v27 = vld [vmem:[%s0] sm:$0xf]
    %v28 = vld [vmem:[%s2] sm:$0xff]
    %v29 = vld [vmem:[%s2 + $0x8] sm:$0xff]
    %v30 = vld [vmem:[%s2 + $0x10] sm:$0xff]
    %v31 = vld [vmem:[%s2 + $0x18] sm:$0xff]
    %v32 = vld [vmem:[%s2 + $0x20] sm:$0xf]
    %34 = vset.pattern.permute.xlu0 0
    %35 = vperm.xlu0 %34, %v28
    %v36 = vpop.permute.xlu0 %35
    %39 = vset.pattern.permute.xlu0 0
    %40 = vperm.xlu0 %39, %v29
    %v41 = vpop.permute.xlu0 %40
    %44 = vset.pattern.permute.xlu0 0
    %45 = vperm.xlu0 %44, %v30
    %v46 = vpop.permute.xlu0 %45
    %49 = vset.pattern.permute.xlu0 0
    %50 = vperm.xlu0 %49, %v31
    %v51 = vpop.permute.xlu0 %50
    %54 = vset.pattern.permute.xlu0 0
    %55 = vperm.xlu0 %54, %v32
    %v56 = vpop.permute.xlu0 %55
    %vm58 = vcmask 31744
    %v60 = vsel %vm58, %v22, 0
    %v63 = vsel %vm58, %v23, 0
    %v66 = vsel %vm58, %v24, 0
    %v69 = vsel %vm58, %v25, 0
    %v72 = vsel %vm58, %v26, 0
    %vm74 = vcmask 1043456
    %v76 = vsel %vm74, %v27, 0
    %78 = vmatprep.subr.mxu0 0.0
    %v79 = vand.u32 %v76, 4294901760
    %80 = vmatpush1.msra.mxu0 %v79
    %81 = vmatprep.subr.mxu0 0.0
    %82 = vmatpush1.msra.mxu0 0.0
    %83 = vmatprep.subr.mxu0 0.0
    %84 = vmatpush1.msra.mxu0 0.0
    %85 = vmatprep.subr.mxu0 0.0
    %86 = vmatpush1.msra.mxu0 0.0
    %87 = vmatprep.subr.mxu0 0.0
    %88 = vmatpush1.msra.mxu0 0.0
    %89 = vmatprep.subr.mxu0 0.0
    %90 = vmatpush1.msra.mxu0 0.0
    %91 = vmatprep.subr.mxu0 0.0
    %92 = vmatpush1.msra.mxu0 0.0
    %93 = vmatprep.subr.mxu0 0.0
    %94 = vmatpush1.msra.mxu0 0.0
    %95 = vmatprep.subr.mxu0 0.0
    %96 = vmatpush1.msra.mxu0 0.0
    %97 = vmatprep.subr.mxu0 0.0
    %98 = vmatpush1.msra.mxu0 0.0
    %99 = vmatprep.subr.mxu0 0.0
    %100 = vmatpush1.msra.mxu0 0.0
    %101 = vmatprep.subr.mxu0 0.0
    %102 = vmatpush1.msra.mxu0 0.0
    %103 = vmatprep.subr.mxu0 0.0
    %104 = vmatpush1.msra.mxu0 0.0
    %105 = vmatprep.subr.mxu0 0.0
    %106 = vmatpush1.msra.mxu0 0.0
    %107 = vmatprep.subr.mxu0 0.0
    %108 = vmatpush1.msra.mxu0 0.0
    %109 = vmatprep.subr.mxu0 0.0
    %110 = vmatpush1.msra.mxu0 0.0
    %111 = vmatprep.subr.mxu0 0.0
    %112 = vmatpush1.msra.mxu0 0.0
    %113 = vmatprep.subr.mxu0 0.0
    %114 = vmatpush1.msra.mxu0 0.0
    %115 = vmatprep.subr.mxu0 0.0
    %116 = vmatpush1.msra.mxu0 0.0
    %117 = vmatprep.subr.mxu0 0.0
    %118 = vmatpush1.msra.mxu0 0.0
    %119 = vmatprep.subr.mxu0 0.0
    %120 = vmatpush1.msra.mxu0 0.0
    %121 = vmatprep.subr.mxu0 0.0
    %122 = vmatpush1.msra.mxu0 0.0
    %123 = vmatprep.subr.mxu0 0.0
    %124 = vmatpush1.msra.mxu0 0.0
    %125 = vmatprep.subr.mxu0 0.0
    %126 = vmatpush1.msra.mxu0 0.0
    %127 = vmatprep.subr.mxu0 0.0
    %128 = vmatpush1.msra.mxu0 0.0
    %129 = vmatprep.subr.mxu0 0.0
    %130 = vmatpush1.msra.mxu0 0.0
    %131 = vmatprep.subr.mxu0 0.0
    %132 = vmatpush1.msra.mxu0 0.0
    %133 = vmatprep.subr.mxu0 0.0
    %134 = vmatpush1.msra.mxu0 0.0
    %135 = vmatprep.subr.mxu0 0.0
    %136 = vmatpush1.msra.mxu0 0.0
    %137 = vmatprep.subr.mxu0 0.0
    %138 = vmatpush1.msra.mxu0 0.0
    %139 = vmatprep.subr.mxu0 0.0
    %140 = vmatpush1.msra.mxu0 0.0
    %141 = vmatprep.subr.mxu0 0.0
    %142 = vmatpush1.msra.mxu0 0.0
    %143 = vmatprep.mubr.f32.mxu0 0.0
    %v144 = vand.u32 %v60, 4294901760
    %v145 = vsub.f32 %v60, %v144
    %v146 = vand.u32 %v145, 4294901760
    %v147 = vsub.f32 %v145, %v146
    %v148 = vand.u32 %v147, 4294901760
    %149 = vmatmul.mubr.f32.gmra.mrb[0].mxu0 %v148
    %v150 = vpop.f32.mrb[0].mxu0
    %v151 = vadd.f32 %v36, %v150
    %v152 = vpop.f32.mrb[0].mxu0
    %153 = vmatprep.mubr.f32.mxu0 0.0
    %v154 = vand.u32 %v63, 4294901760
    %v155 = vsub.f32 %v63, %v154
    %v156 = vand.u32 %v155, 4294901760
    %v157 = vsub.f32 %v155, %v156
    %v158 = vand.u32 %v157, 4294901760
    %159 = vmatmul.mubr.f32.gmra.mrb[0].mxu0 %v158
    %v160 = vpop.f32.mrb[0].mxu0
    %v161 = vadd.f32 %v41, %v160
    %v162 = vpop.f32.mrb[0].mxu0
    %163 = vmatprep.mubr.f32.mxu0 0.0
    %v164 = vand.u32 %v66, 4294901760
    %v165 = vsub.f32 %v66, %v164
    %v166 = vand.u32 %v165, 4294901760
    %v167 = vsub.f32 %v165, %v166
    %v168 = vand.u32 %v167, 4294901760
    %169 = vmatmul.mubr.f32.gmra.mrb[0].mxu0 %v168
    %v170 = vpop.f32.mrb[0].mxu0
    %v171 = vadd.f32 %v46, %v170
    %v172 = vpop.f32.mrb[0].mxu0
    %173 = vmatprep.mubr.f32.mxu0 0.0
    %v174 = vand.u32 %v69, 4294901760
    %v175 = vsub.f32 %v69, %v174
    %v176 = vand.u32 %v175, 4294901760
    %v177 = vsub.f32 %v175, %v176
    %v178 = vand.u32 %v177, 4294901760
    %179 = vmatmul.mubr.f32.gmra.mrb[0].mxu0 %v178
    %v180 = vpop.f32.mrb[0].mxu0
    %v181 = vadd.f32 %v51, %v180
    %v182 = vpop.f32.mrb[0].mxu0
    %183 = vmatprep.mubr.f32.mxu0 0.0
    %v184 = vand.u32 %v72, 4294901760
    %v185 = vsub.f32 %v72, %v184
    %v186 = vand.u32 %v185, 4294901760
    %v187 = vsub.f32 %v185, %v186
    %v188 = vand.u32 %v187, 4294901760
    %189 = vmatmul.mubr.f32.gmra.mrb[0].mxu0 %v188
    %v190 = vpop.f32.mrb[0].mxu0
    %v191 = vadd.f32 %v56, %v190
    %v192 = vpop.f32.mrb[0].mxu0
    %193 = vdwg.mxu0
    %194 = vmatprep.subr.mxu0 0.0
    %v195 = vand.u32 %v76, 4294901760
    %v196 = vsub.f32 %v76, %v195
    %v197 = vand.u32 %v196, 4294901760
    %v198 = vsub.f32 %v196, %v197
    %v199 = vand.u32 %v198, 4294901760
    %200 = vmatpush1.msra.mxu0 %v199
    %201 = vmatprep.subr.mxu0 0.0
    %202 = vmatpush1.msra.mxu0 0.0
    %203 = vmatprep.subr.mxu0 0.0
    %204 = vmatpush1.msra.mxu0 0.0
    %205 = vmatprep.subr.mxu0 0.0
    %206 = vmatpush1.msra.mxu0 0.0
    %207 = vmatprep.subr.mxu0 0.0
    %208 = vmatpush1.msra.mxu0 0.0
    %209 = vmatprep.subr.mxu0 0.0
    %210 = vmatpush1.msra.mxu0 0.0
    %211 = vmatprep.subr.mxu0 0.0
    %212 = vmatpush1.msra.mxu0 0.0
    %213 = vmatprep.subr.mxu0 0.0
    %214 = vmatpush1.msra.mxu0 0.0
    %215 = vmatprep.subr.mxu0 0.0
    %216 = vmatpush1.msra.mxu0 0.0
    %217 = vmatprep.subr.mxu0 0.0
    %218 = vmatpush1.msra.mxu0 0.0
    %219 = vmatprep.subr.mxu0 0.0
    %220 = vmatpush1.msra.mxu0 0.0
    %221 = vmatprep.subr.mxu0 0.0
    %222 = vmatpush1.msra.mxu0 0.0
    %223 = vmatprep.subr.mxu0 0.0
    %224 = vmatpush1.msra.mxu0 0.0
    %225 = vmatprep.subr.mxu0 0.0
    %226 = vmatpush1.msra.mxu0 0.0
    %227 = vmatprep.subr.mxu0 0.0
    %228 = vmatpush1.msra.mxu0 0.0
    %229 = vmatprep.subr.mxu0 0.0
    %230 = vmatpush1.msra.mxu0 0.0
    %231 = vmatprep.subr.mxu0 0.0
    %232 = vmatpush1.msra.mxu0 0.0
    %233 = vmatprep.subr.mxu0 0.0
    %234 = vmatpush1.msra.mxu0 0.0
    %235 = vmatprep.subr.mxu0 0.0
    %236 = vmatpush1.msra.mxu0 0.0
    %237 = vmatprep.subr.mxu0 0.0
    %238 = vmatpush1.msra.mxu0 0.0
    %239 = vmatprep.subr.mxu0 0.0
    %240 = vmatpush1.msra.mxu0 0.0
    %241 = vmatprep.subr.mxu0 0.0
    %242 = vmatpush1.msra.mxu0 0.0
    %243 = vmatprep.subr.mxu0 0.0
    %244 = vmatpush1.msra.mxu0 0.0
    %245 = vmatprep.subr.mxu0 0.0
    %246 = vmatpush1.msra.mxu0 0.0
    %247 = vmatprep.subr.mxu0 0.0
    %248 = vmatpush1.msra.mxu0 0.0
    %249 = vmatprep.subr.mxu0 0.0
    %250 = vmatpush1.msra.mxu0 0.0
    %251 = vmatprep.subr.mxu0 0.0
    %252 = vmatpush1.msra.mxu0 0.0
    %253 = vmatprep.subr.mxu0 0.0
    %254 = vmatpush1.msra.mxu0 0.0
    %255 = vmatprep.subr.mxu0 0.0
    %256 = vmatpush1.msra.mxu0 0.0
    %257 = vmatprep.subr.mxu0 0.0
    %258 = vmatpush1.msra.mxu0 0.0
    %259 = vmatprep.subr.mxu0 0.0
    %260 = vmatpush1.msra.mxu0 0.0
    %261 = vmatprep.subr.mxu0 0.0
    %262 = vmatpush1.msra.mxu0 0.0
    %263 = vmatprep.mubr.f32.mxu0 0.0
    %v264 = vand.u32 %v60, 4294901760
    %265 = vmatmul.mubr.f32.gmra.mrb[0].mxu0 %v264
    %v266 = vpop.f32.mrb[0].mxu0
    %v267 = vadd.f32 %v151, %v266
    %v268 = vpop.f32.mrb[0].mxu0
    %269 = vmatprep.mubr.f32.mxu0 0.0
    %v270 = vand.u32 %v63, 4294901760
    %271 = vmatmul.mubr.f32.gmra.mrb[0].mxu0 %v270
    %v272 = vpop.f32.mrb[0].mxu0
    %v273 = vadd.f32 %v161, %v272
    %v274 = vpop.f32.mrb[0].mxu0
    %275 = vmatprep.mubr.f32.mxu0 0.0
    %v276 = vand.u32 %v66, 4294901760
    %277 = vmatmul.mubr.f32.gmra.mrb[0].mxu0 %v276
    %v278 = vpop.f32.mrb[0].mxu0
    %v279 = vadd.f32 %v171, %v278
    %v280 = vpop.f32.mrb[0].mxu0
    %281 = vmatprep.mubr.f32.mxu0 0.0
    %v282 = vand.u32 %v69, 4294901760
    %283 = vmatmul.mubr.f32.gmra.mrb[0].mxu0 %v282
    %v284 = vpop.f32.mrb[0].mxu0
    %v285 = vadd.f32 %v181, %v284
    %v286 = vpop.f32.mrb[0].mxu0
    %287 = vmatprep.mubr.f32.mxu0 0.0
    %v288 = vand.u32 %v72, 4294901760
    %289 = vmatmul.mubr.f32.gmra.mrb[0].mxu0 %v288
    %v290 = vpop.f32.mrb[0].mxu0
    %v291 = vadd.f32 %v191, %v290
    %v292 = vpop.f32.mrb[0].mxu0
    %293 = vdwg.mxu0
    %294 = vmatprep.subr.mxu0 0.0
    %v295 = vand.u32 %v76, 4294901760
    %v296 = vsub.f32 %v76, %v295
    %297 = vmatpush1.msra.mxu0 %v296
    %298 = vmatprep.subr.mxu0 0.0
    %299 = vmatpush1.msra.mxu0 0.0
    %300 = vmatprep.subr.mxu0 0.0
    %301 = vmatpush1.msra.mxu0 0.0
    %302 = vmatprep.subr.mxu0 0.0
    %303 = vmatpush1.msra.mxu0 0.0
    %304 = vmatprep.subr.mxu0 0.0
    %305 = vmatpush1.msra.mxu0 0.0
    %306 = vmatprep.subr.mxu0 0.0
    %307 = vmatpush1.msra.mxu0 0.0
    %308 = vmatprep.subr.mxu0 0.0
    %309 = vmatpush1.msra.mxu0 0.0
    %310 = vmatprep.subr.mxu0 0.0
    %311 = vmatpush1.msra.mxu0 0.0
    %312 = vmatprep.subr.mxu0 0.0
    %313 = vmatpush1.msra.mxu0 0.0
    %314 = vmatprep.subr.mxu0 0.0
    %315 = vmatpush1.msra.mxu0 0.0
    %316 = vmatprep.subr.mxu0 0.0
    %317 = vmatpush1.msra.mxu0 0.0
    %318 = vmatprep.subr.mxu0 0.0
    %319 = vmatpush1.msra.mxu0 0.0
    %320 = vmatprep.subr.mxu0 0.0
    %321 = vmatpush1.msra.mxu0 0.0
    %322 = vmatprep.subr.mxu0 0.0
    %323 = vmatpush1.msra.mxu0 0.0
    %324 = vmatprep.subr.mxu0 0.0
    %325 = vmatpush1.msra.mxu0 0.0
    %326 = vmatprep.subr.mxu0 0.0
    %327 = vmatpush1.msra.mxu0 0.0
    %328 = vmatprep.subr.mxu0 0.0
    %329 = vmatpush1.msra.mxu0 0.0
    %330 = vmatprep.subr.mxu0 0.0
    %331 = vmatpush1.msra.mxu0 0.0
    %332 = vmatprep.subr.mxu0 0.0
    %333 = vmatpush1.msra.mxu0 0.0
    %334 = vmatprep.subr.mxu0 0.0
    %335 = vmatpush1.msra.mxu0 0.0
    %336 = vmatprep.subr.mxu0 0.0
    %337 = vmatpush1.msra.mxu0 0.0
    %338 = vmatprep.subr.mxu0 0.0
    %339 = vmatpush1.msra.mxu0 0.0
    %340 = vmatprep.subr.mxu0 0.0
    %341 = vmatpush1.msra.mxu0 0.0
    %342 = vmatprep.subr.mxu0 0.0
    %343 = vmatpush1.msra.mxu0 0.0
    %344 = vmatprep.subr.mxu0 0.0
    %345 = vmatpush1.msra.mxu0 0.0
    %346 = vmatprep.subr.mxu0 0.0
    %347 = vmatpush1.msra.mxu0 0.0
    %348 = vmatprep.subr.mxu0 0.0
    %349 = vmatpush1.msra.mxu0 0.0
    %350 = vmatprep.subr.mxu0 0.0
    %351 = vmatpush1.msra.mxu0 0.0
    %352 = vmatprep.subr.mxu0 0.0
    %353 = vmatpush1.msra.mxu0 0.0
    %354 = vmatprep.subr.mxu0 0.0
    %355 = vmatpush1.msra.mxu0 0.0
    %356 = vmatprep.subr.mxu0 0.0
    %357 = vmatpush1.msra.mxu0 0.0
    %358 = vmatprep.subr.mxu0 0.0
    %359 = vmatpush1.msra.mxu0 0.0
    %360 = vmatprep.mubr.f32.mxu0 0.0
    %v361 = vand.u32 %v60, 4294901760
    %v362 = vsub.f32 %v60, %v361
    %363 = vmatmul.mubr.f32.gmra.mrb[0].mxu0 %v362
    %v364 = vpop.f32.mrb[0].mxu0
    %v365 = vadd.f32 %v267, %v364
    %v366 = vpop.f32.mrb[0].mxu0
    %367 = vmatprep.mubr.f32.mxu0 0.0
    %v368 = vand.u32 %v63, 4294901760
    %v369 = vsub.f32 %v63, %v368
    %370 = vmatmul.mubr.f32.gmra.mrb[0].mxu0 %v369
    %v371 = vpop.f32.mrb[0].mxu0
    %v372 = vadd.f32 %v273, %v371
    %v373 = vpop.f32.mrb[0].mxu0
    %374 = vmatprep.mubr.f32.mxu0 0.0
    %v375 = vand.u32 %v66, 4294901760
    %v376 = vsub.f32 %v66, %v375
    %377 = vmatmul.mubr.f32.gmra.mrb[0].mxu0 %v376
    %v378 = vpop.f32.mrb[0].mxu0
    %v379 = vadd.f32 %v279, %v378
    %v380 = vpop.f32.mrb[0].mxu0
    %381 = vmatprep.mubr.f32.mxu0 0.0
    %v382 = vand.u32 %v69, 4294901760
    %v383 = vsub.f32 %v69, %v382
    %384 = vmatmul.mubr.f32.gmra.mrb[0].mxu0 %v383
    %v385 = vpop.f32.mrb[0].mxu0
    %v386 = vadd.f32 %v285, %v385
    %v387 = vpop.f32.mrb[0].mxu0
    %388 = vmatprep.mubr.f32.mxu0 0.0
    %v389 = vand.u32 %v72, 4294901760
    %v390 = vsub.f32 %v72, %v389
    %391 = vmatmul.mubr.f32.gmra.mrb[0].mxu0 %v390
    %v392 = vpop.f32.mrb[0].mxu0
    %v393 = vadd.f32 %v291, %v392
    %v394 = vpop.f32.mrb[0].mxu0
    %395 = vdwg.mxu0
    %396 = vmatprep.subr.mxu0 0.0
    %v397 = vand.u32 %v76, 4294901760
    %398 = vmatpush1.msra.mxu0 %v397
    %399 = vmatprep.subr.mxu0 0.0
    %400 = vmatpush1.msra.mxu0 0.0
    %401 = vmatprep.subr.mxu0 0.0
    %402 = vmatpush1.msra.mxu0 0.0
    %403 = vmatprep.subr.mxu0 0.0
    %404 = vmatpush1.msra.mxu0 0.0
    %405 = vmatprep.subr.mxu0 0.0
    %406 = vmatpush1.msra.mxu0 0.0
    %407 = vmatprep.subr.mxu0 0.0
    %408 = vmatpush1.msra.mxu0 0.0
    %409 = vmatprep.subr.mxu0 0.0
    %410 = vmatpush1.msra.mxu0 0.0
    %411 = vmatprep.subr.mxu0 0.0
    %412 = vmatpush1.msra.mxu0 0.0
    %413 = vmatprep.subr.mxu0 0.0
    %414 = vmatpush1.msra.mxu0 0.0
    %415 = vmatprep.subr.mxu0 0.0
    %416 = vmatpush1.msra.mxu0 0.0
    %417 = vmatprep.subr.mxu0 0.0
    %418 = vmatpush1.msra.mxu0 0.0
    %419 = vmatprep.subr.mxu0 0.0
    %420 = vmatpush1.msra.mxu0 0.0
    %421 = vmatprep.subr.mxu0 0.0
    %422 = vmatpush1.msra.mxu0 0.0
    %423 = vmatprep.subr.mxu0 0.0
    %424 = vmatpush1.msra.mxu0 0.0
    %425 = vmatprep.subr.mxu0 0.0
    %426 = vmatpush1.msra.mxu0 0.0
    %427 = vmatprep.subr.mxu0 0.0
    %428 = vmatpush1.msra.mxu0 0.0
    %429 = vmatprep.subr.mxu0 0.0
    %430 = vmatpush1.msra.mxu0 0.0
    %431 = vmatprep.subr.mxu0 0.0
    %432 = vmatpush1.msra.mxu0 0.0
    %433 = vmatprep.subr.mxu0 0.0
    %434 = vmatpush1.msra.mxu0 0.0
    %435 = vmatprep.subr.mxu0 0.0
    %436 = vmatpush1.msra.mxu0 0.0
    %437 = vmatprep.subr.mxu0 0.0
    %438 = vmatpush1.msra.mxu0 0.0
    %439 = vmatprep.subr.mxu0 0.0
    %440 = vmatpush1.msra.mxu0 0.0
    %441 = vmatprep.subr.mxu0 0.0
    %442 = vmatpush1.msra.mxu0 0.0
    %443 = vmatprep.subr.mxu0 0.0
    %444 = vmatpush1.msra.mxu0 0.0
    %445 = vmatprep.subr.mxu0 0.0
    %446 = vmatpush1.msra.mxu0 0.0
    %447 = vmatprep.subr.mxu0 0.0
    %448 = vmatpush1.msra.mxu0 0.0
    %449 = vmatprep.subr.mxu0 0.0
    %450 = vmatpush1.msra.mxu0 0.0
    %451 = vmatprep.subr.mxu0 0.0
    %452 = vmatpush1.msra.mxu0 0.0
    %453 = vmatprep.subr.mxu0 0.0
    %454 = vmatpush1.msra.mxu0 0.0
    %455 = vmatprep.subr.mxu0 0.0
    %456 = vmatpush1.msra.mxu0 0.0
    %457 = vmatprep.subr.mxu0 0.0
    %458 = vmatpush1.msra.mxu0 0.0
    %459 = vmatprep.subr.mxu0 0.0
    %460 = vmatpush1.msra.mxu0 0.0
    %461 = vmatprep.mubr.f32.mxu0 0.0
    %v462 = vand.u32 %v60, 4294901760
    %v463 = vsub.f32 %v60, %v462
    %v464 = vand.u32 %v463, 4294901760
    %465 = vmatmul.mubr.f32.gmra.mrb[0].mxu0 %v464
    %v466 = vpop.f32.mrb[0].mxu0
    %v467 = vadd.f32 %v365, %v466
    %v468 = vpop.f32.mrb[0].mxu0
    %469 = vmatprep.mubr.f32.mxu0 0.0
    %v470 = vand.u32 %v63, 4294901760
    %v471 = vsub.f32 %v63, %v470
    %v472 = vand.u32 %v471, 4294901760
    %473 = vmatmul.mubr.f32.gmra.mrb[0].mxu0 %v472
    %v474 = vpop.f32.mrb[0].mxu0
    %v475 = vadd.f32 %v372, %v474
    %v476 = vpop.f32.mrb[0].mxu0
    %477 = vmatprep.mubr.f32.mxu0 0.0
    %v478 = vand.u32 %v66, 4294901760
    %v479 = vsub.f32 %v66, %v478
    %v480 = vand.u32 %v479, 4294901760
    %481 = vmatmul.mubr.f32.gmra.mrb[0].mxu0 %v480
    %v482 = vpop.f32.mrb[0].mxu0
    %v483 = vadd.f32 %v379, %v482
    %v484 = vpop.f32.mrb[0].mxu0
    %485 = vmatprep.mubr.f32.mxu0 0.0
    %v486 = vand.u32 %v69, 4294901760
    %v487 = vsub.f32 %v69, %v486
    %v488 = vand.u32 %v487, 4294901760
    %489 = vmatmul.mubr.f32.gmra.mrb[0].mxu0 %v488
    %v490 = vpop.f32.mrb[0].mxu0
    %v491 = vadd.f32 %v386, %v490
    %v492 = vpop.f32.mrb[0].mxu0
    %493 = vmatprep.mubr.f32.mxu0 0.0
    %v494 = vand.u32 %v72, 4294901760
    %v495 = vsub.f32 %v72, %v494
    %v496 = vand.u32 %v495, 4294901760
    %497 = vmatmul.mubr.f32.gmra.mrb[0].mxu0 %v496
    %v498 = vpop.f32.mrb[0].mxu0
    %v499 = vadd.f32 %v393, %v498
    %v500 = vpop.f32.mrb[0].mxu0
    %501 = vdwg.mxu0
    %502 = vmatprep.subr.mxu0 0.0
    %v503 = vand.u32 %v76, 4294901760
    %v504 = vsub.f32 %v76, %v503
    %v505 = vand.u32 %v504, 4294901760
    %506 = vmatpush1.msra.mxu0 %v505
    %507 = vmatprep.subr.mxu0 0.0
    %508 = vmatpush1.msra.mxu0 0.0
    %509 = vmatprep.subr.mxu0 0.0
    %510 = vmatpush1.msra.mxu0 0.0
    %511 = vmatprep.subr.mxu0 0.0
    %512 = vmatpush1.msra.mxu0 0.0
    %513 = vmatprep.subr.mxu0 0.0
    %514 = vmatpush1.msra.mxu0 0.0
    %515 = vmatprep.subr.mxu0 0.0
    %516 = vmatpush1.msra.mxu0 0.0
    %517 = vmatprep.subr.mxu0 0.0
    %518 = vmatpush1.msra.mxu0 0.0
    %519 = vmatprep.subr.mxu0 0.0
    %520 = vmatpush1.msra.mxu0 0.0
    %521 = vmatprep.subr.mxu0 0.0
    %522 = vmatpush1.msra.mxu0 0.0
    %523 = vmatprep.subr.mxu0 0.0
    %524 = vmatpush1.msra.mxu0 0.0
    %525 = vmatprep.subr.mxu0 0.0
    %526 = vmatpush1.msra.mxu0 0.0
    %527 = vmatprep.subr.mxu0 0.0
    %528 = vmatpush1.msra.mxu0 0.0
    %529 = vmatprep.subr.mxu0 0.0
    %530 = vmatpush1.msra.mxu0 0.0
    %531 = vmatprep.subr.mxu0 0.0
    %532 = vmatpush1.msra.mxu0 0.0
    %533 = vmatprep.subr.mxu0 0.0
    %534 = vmatpush1.msra.mxu0 0.0
    %535 = vmatprep.subr.mxu0 0.0
    %536 = vmatpush1.msra.mxu0 0.0
    %537 = vmatprep.subr.mxu0 0.0
    %538 = vmatpush1.msra.mxu0 0.0
    %539 = vmatprep.subr.mxu0 0.0
    %540 = vmatpush1.msra.mxu0 0.0
    %541 = vmatprep.subr.mxu0 0.0
    %542 = vmatpush1.msra.mxu0 0.0
    %543 = vmatprep.subr.mxu0 0.0
    %544 = vmatpush1.msra.mxu0 0.0
    %545 = vmatprep.subr.mxu0 0.0
    %546 = vmatpush1.msra.mxu0 0.0
    %547 = vmatprep.subr.mxu0 0.0
    %548 = vmatpush1.msra.mxu0 0.0
    %549 = vmatprep.subr.mxu0 0.0
    %550 = vmatpush1.msra.mxu0 0.0
    %551 = vmatprep.subr.mxu0 0.0
    %552 = vmatpush1.msra.mxu0 0.0
    %553 = vmatprep.subr.mxu0 0.0
    %554 = vmatpush1.msra.mxu0 0.0
    %555 = vmatprep.subr.mxu0 0.0
    %556 = vmatpush1.msra.mxu0 0.0
    %557 = vmatprep.subr.mxu0 0.0
    %558 = vmatpush1.msra.mxu0 0.0
    %559 = vmatprep.subr.mxu0 0.0
    %560 = vmatpush1.msra.mxu0 0.0
    %561 = vmatprep.subr.mxu0 0.0
    %562 = vmatpush1.msra.mxu0 0.0
    %563 = vmatprep.subr.mxu0 0.0
    %564 = vmatpush1.msra.mxu0 0.0
    %565 = vmatprep.subr.mxu0 0.0
    %566 = vmatpush1.msra.mxu0 0.0
    %567 = vmatprep.subr.mxu0 0.0
    %568 = vmatpush1.msra.mxu0 0.0
    %569 = vmatprep.mubr.f32.mxu0 0.0
    %v570 = vand.u32 %v60, 4294901760
    %571 = vmatmul.mubr.f32.gmra.mrb[0].mxu0 %v570
    %v572 = vpop.f32.mrb[0].mxu0
    %v573 = vadd.f32 %v467, %v572
    %v574 = vpop.f32.mrb[0].mxu0
    %575 = vmatprep.mubr.f32.mxu0 0.0
    %v576 = vand.u32 %v63, 4294901760
    %577 = vmatmul.mubr.f32.gmra.mrb[0].mxu0 %v576
    %v578 = vpop.f32.mrb[0].mxu0
    %v579 = vadd.f32 %v475, %v578
    %v580 = vpop.f32.mrb[0].mxu0
    %581 = vmatprep.mubr.f32.mxu0 0.0
    %v582 = vand.u32 %v66, 4294901760
    %583 = vmatmul.mubr.f32.gmra.mrb[0].mxu0 %v582
    %v584 = vpop.f32.mrb[0].mxu0
    %v585 = vadd.f32 %v483, %v584
    %v586 = vpop.f32.mrb[0].mxu0
    %587 = vmatprep.mubr.f32.mxu0 0.0
    %v588 = vand.u32 %v69, 4294901760
    %589 = vmatmul.mubr.f32.gmra.mrb[0].mxu0 %v588
    %v590 = vpop.f32.mrb[0].mxu0
    %v591 = vadd.f32 %v491, %v590
    %v592 = vpop.f32.mrb[0].mxu0
    %593 = vmatprep.mubr.f32.mxu0 0.0
    %v594 = vand.u32 %v72, 4294901760
    %595 = vmatmul.mubr.f32.gmra.mrb[0].mxu0 %v594
    %v596 = vpop.f32.mrb[0].mxu0
    %v597 = vadd.f32 %v499, %v596
    %v598 = vpop.f32.mrb[0].mxu0
    %599 = vdwg.mxu0
    %600 = vmatprep.subr.mxu0 0.0
    %v601 = vand.u32 %v76, 4294901760
    %602 = vmatpush1.msra.mxu0 %v601
    %603 = vmatprep.subr.mxu0 0.0
    %604 = vmatpush1.msra.mxu0 0.0
    %605 = vmatprep.subr.mxu0 0.0
    %606 = vmatpush1.msra.mxu0 0.0
    %607 = vmatprep.subr.mxu0 0.0
    %608 = vmatpush1.msra.mxu0 0.0
    %609 = vmatprep.subr.mxu0 0.0
    %610 = vmatpush1.msra.mxu0 0.0
    %611 = vmatprep.subr.mxu0 0.0
    %612 = vmatpush1.msra.mxu0 0.0
    %613 = vmatprep.subr.mxu0 0.0
    %614 = vmatpush1.msra.mxu0 0.0
    %615 = vmatprep.subr.mxu0 0.0
    %616 = vmatpush1.msra.mxu0 0.0
    %617 = vmatprep.subr.mxu0 0.0
    %618 = vmatpush1.msra.mxu0 0.0
    %619 = vmatprep.subr.mxu0 0.0
    %620 = vmatpush1.msra.mxu0 0.0
    %621 = vmatprep.subr.mxu0 0.0
    %622 = vmatpush1.msra.mxu0 0.0
    %623 = vmatprep.subr.mxu0 0.0
    %624 = vmatpush1.msra.mxu0 0.0
    %625 = vmatprep.subr.mxu0 0.0
    %626 = vmatpush1.msra.mxu0 0.0
    %627 = vmatprep.subr.mxu0 0.0
    %628 = vmatpush1.msra.mxu0 0.0
    %629 = vmatprep.subr.mxu0 0.0
    %630 = vmatpush1.msra.mxu0 0.0
    %631 = vmatprep.subr.mxu0 0.0
    %632 = vmatpush1.msra.mxu0 0.0
    %633 = vmatprep.subr.mxu0 0.0
    %634 = vmatpush1.msra.mxu0 0.0
    %635 = vmatprep.subr.mxu0 0.0
    %636 = vmatpush1.msra.mxu0 0.0
    %637 = vmatprep.subr.mxu0 0.0
    %638 = vmatpush1.msra.mxu0 0.0
    %639 = vmatprep.subr.mxu0 0.0
    %640 = vmatpush1.msra.mxu0 0.0
    %641 = vmatprep.subr.mxu0 0.0
    %642 = vmatpush1.msra.mxu0 0.0
    %643 = vmatprep.subr.mxu0 0.0
    %644 = vmatpush1.msra.mxu0 0.0
    %645 = vmatprep.subr.mxu0 0.0
    %646 = vmatpush1.msra.mxu0 0.0
    %647 = vmatprep.subr.mxu0 0.0
    %648 = vmatpush1.msra.mxu0 0.0
    %649 = vmatprep.subr.mxu0 0.0
    %650 = vmatpush1.msra.mxu0 0.0
    %651 = vmatprep.subr.mxu0 0.0
    %652 = vmatpush1.msra.mxu0 0.0
    %653 = vmatprep.subr.mxu0 0.0
    %654 = vmatpush1.msra.mxu0 0.0
    %655 = vmatprep.subr.mxu0 0.0
    %656 = vmatpush1.msra.mxu0 0.0
    %657 = vmatprep.subr.mxu0 0.0
    %658 = vmatpush1.msra.mxu0 0.0
    %659 = vmatprep.subr.mxu0 0.0
    %660 = vmatpush1.msra.mxu0 0.0
    %661 = vmatprep.subr.mxu0 0.0
    %662 = vmatpush1.msra.mxu0 0.0
    %663 = vmatprep.subr.mxu0 0.0
    %664 = vmatpush1.msra.mxu0 0.0
    %665 = vmatprep.mubr.f32.mxu0 0.0
    %v666 = vand.u32 %v60, 4294901760
    %667 = vmatmul.mubr.f32.gmra.mrb[0].mxu0 %v666
    %v668 = vpop.f32.mrb[0].mxu0
    %v669 = vadd.f32 %v573, %v668
    %v670 = vpop.f32.mrb[0].mxu0
    %671 = vmatprep.mubr.f32.mxu0 0.0
    %v672 = vand.u32 %v63, 4294901760
    %673 = vmatmul.mubr.f32.gmra.mrb[0].mxu0 %v672
    %v674 = vpop.f32.mrb[0].mxu0
    %v675 = vadd.f32 %v579, %v674
    %v676 = vpop.f32.mrb[0].mxu0
    %677 = vmatprep.mubr.f32.mxu0 0.0
    %v678 = vand.u32 %v66, 4294901760
    %679 = vmatmul.mubr.f32.gmra.mrb[0].mxu0 %v678
    %v680 = vpop.f32.mrb[0].mxu0
    %v681 = vadd.f32 %v585, %v680
    %v682 = vpop.f32.mrb[0].mxu0
    %683 = vmatprep.mubr.f32.mxu0 0.0
    %v684 = vand.u32 %v69, 4294901760
    %685 = vmatmul.mubr.f32.gmra.mrb[0].mxu0 %v684
    %v686 = vpop.f32.mrb[0].mxu0
    %v687 = vadd.f32 %v591, %v686
    %v688 = vpop.f32.mrb[0].mxu0
    %689 = vmatprep.mubr.f32.mxu0 0.0
    %v690 = vand.u32 %v72, 4294901760
    %691 = vmatmul.mubr.f32.gmra.mrb[0].mxu0 %v690
    %v692 = vpop.f32.mrb[0].mxu0
    %v693 = vadd.f32 %v597, %v692
    %v694 = vpop.f32.mrb[0].mxu0
    %695 = vdwg.mxu0
    %v696 = vtanh.pop %v669
    %v697 = vtanh.pop %v675
    %v698 = vtanh.pop %v681
    %v699 = vtanh.pop %v687
    %v700 = vtanh.pop %v693
    %v701 = vld [vmem:[%s3] sm:$0x1]
    %s702 = sld [smem:[#allocation2]]
    %v703 = vstv %s702
    %vm704 = vcmask 293888
    %v706 = vsel %vm704, %v701, 0
    %v709 = vsel %vm74, %v700, 0
    %711 = vmatprep.subr.mxu0 0.0
    %v712 = vand.u32 %v696, 4294901760
    %713 = vmatpush1.msra.mxu0 %v712
    %714 = vmatprep.subr.mxu0 0.0
    %v715 = vand.u32 %v697, 4294901760
    %716 = vmatpush1.msra.mxu0 %v715
    %717 = vmatprep.subr.mxu0 0.0
    %v718 = vand.u32 %v698, 4294901760
    %719 = vmatpush1.msra.mxu0 %v718
    %720 = vmatprep.subr.mxu0 0.0
    %v721 = vand.u32 %v699, 4294901760
    %722 = vmatpush1.msra.mxu0 %v721
    %723 = vmatprep.subr.mxu0 0.0
    %v724 = vand.u32 %v709, 4294901760
    %725 = vmatpush1.msra.mxu0 %v724
    %726 = vmatprep.subr.mxu0 0.0
    %727 = vmatpush1.msra.mxu0 0.0
    %728 = vmatprep.subr.mxu0 0.0
    %729 = vmatpush1.msra.mxu0 0.0
    %730 = vmatprep.subr.mxu0 0.0
    %731 = vmatpush1.msra.mxu0 0.0
    %732 = vmatprep.subr.mxu0 0.0
    %733 = vmatpush1.msra.mxu0 0.0
    %734 = vmatprep.subr.mxu0 0.0
    %735 = vmatpush1.msra.mxu0 0.0
    %736 = vmatprep.subr.mxu0 0.0
    %737 = vmatpush1.msra.mxu0 0.0
    %738 = vmatprep.subr.mxu0 0.0
    %739 = vmatpush1.msra.mxu0 0.0
    %740 = vmatprep.subr.mxu0 0.0
    %741 = vmatpush1.msra.mxu0 0.0
    %742 = vmatprep.subr.mxu0 0.0
    %743 = vmatpush1.msra.mxu0 0.0
    %744 = vmatprep.subr.mxu0 0.0
    %745 = vmatpush1.msra.mxu0 0.0
    %746 = vmatprep.subr.mxu0 0.0
    %747 = vmatpush1.msra.mxu0 0.0
    %748 = vmatprep.subr.mxu0 0.0
    %749 = vmatpush1.msra.mxu0 0.0
    %750 = vmatprep.subr.mxu0 0.0
    %751 = vmatpush1.msra.mxu0 0.0
    %752 = vmatprep.subr.mxu0 0.0
    %753 = vmatpush1.msra.mxu0 0.0
    %754 = vmatprep.subr.mxu0 0.0
    %755 = vmatpush1.msra.mxu0 0.0
    %756 = vmatprep.subr.mxu0 0.0
    %757 = vmatpush1.msra.mxu0 0.0
    %758 = vmatprep.subr.mxu0 0.0
    %759 = vmatpush1.msra.mxu0 0.0
    %760 = vmatprep.subr.mxu0 0.0
    %761 = vmatpush1.msra.mxu0 0.0
    %762 = vmatprep.subr.mxu0 0.0
    %763 = vmatpush1.msra.mxu0 0.0
    %764 = vmatprep.subr.mxu0 0.0
    %765 = vmatpush1.msra.mxu0 0.0
    %766 = vmatprep.subr.mxu0 0.0
    %767 = vmatpush1.msra.mxu0 0.0
    %768 = vmatprep.subr.mxu0 0.0
    %769 = vmatpush1.msra.mxu0 0.0
    %770 = vmatprep.subr.mxu0 0.0
    %771 = vmatpush1.msra.mxu0 0.0
    %772 = vmatprep.subr.mxu0 0.0
    %773 = vmatpush1.msra.mxu0 0.0
    %774 = vmatprep.subr.mxu0 0.0
    %775 = vmatpush1.msra.mxu0 0.0
    %776 = vmatprep.subr.mxu0 0.0
    %777 = vmatpush1.msra.mxu0 0.0
    %778 = vmatprep.subr.mxu0 0.0
    %779 = vmatpush1.msra.mxu0 0.0
    %780 = vmatprep.mubr.f32.mxu0 0.0
    %v781 = vand.u32 %v706, 4294901760
    %v782 = vsub.f32 %v706, %v781
    %v783 = vand.u32 %v782, 4294901760
    %v784 = vsub.f32 %v782, %v783
    %v785 = vand.u32 %v784, 4294901760
    %786 = vmatmul.mubr.f32.gmra.mrb[0].mxu0 %v785
    %v787 = vpop.f32.mrb[0].mxu0
    %v788 = vadd.f32 %v703, %v787
    %v789 = vpop.f32.mrb[0].mxu0
    %790 = vdwg.mxu0
    %791 = vmatprep.subr.mxu0 0.0
    %v792 = vand.u32 %v696, 4294901760
    %v793 = vsub.f32 %v696, %v792
    %v794 = vand.u32 %v793, 4294901760
    %v795 = vsub.f32 %v793, %v794
    %v796 = vand.u32 %v795, 4294901760
    %797 = vmatpush1.msra.mxu0 %v796
    %798 = vmatprep.subr.mxu0 0.0
    %v799 = vand.u32 %v697, 4294901760
    %v800 = vsub.f32 %v697, %v799
    %v801 = vand.u32 %v800, 4294901760
    %v802 = vsub.f32 %v800, %v801
    %v803 = vand.u32 %v802, 4294901760
    %804 = vmatpush1.msra.mxu0 %v803
    %805 = vmatprep.subr.mxu0 0.0
    %v806 = vand.u32 %v698, 4294901760
    %v807 = vsub.f32 %v698, %v806
    %v808 = vand.u32 %v807, 4294901760
    %v809 = vsub.f32 %v807, %v808
    %v810 = vand.u32 %v809, 4294901760
    %811 = vmatpush1.msra.mxu0 %v810
    %812 = vmatprep.subr.mxu0 0.0
    %v813 = vand.u32 %v699, 4294901760
    %v814 = vsub.f32 %v699, %v813
    %v815 = vand.u32 %v814, 4294901760
    %v816 = vsub.f32 %v814, %v815
    %v817 = vand.u32 %v816, 4294901760
    %818 = vmatpush1.msra.mxu0 %v817
    %819 = vmatprep.subr.mxu0 0.0
    %v820 = vand.u32 %v709, 4294901760
    %v821 = vsub.f32 %v709, %v820
    %v822 = vand.u32 %v821, 4294901760
    %v823 = vsub.f32 %v821, %v822
    %v824 = vand.u32 %v823, 4294901760
    %825 = vmatpush1.msra.mxu0 %v824
    %826 = vmatprep.subr.mxu0 0.0
    %827 = vmatpush1.msra.mxu0 0.0
    %828 = vmatprep.subr.mxu0 0.0
    %829 = vmatpush1.msra.mxu0 0.0
    %830 = vmatprep.subr.mxu0 0.0
    %831 = vmatpush1.msra.mxu0 0.0
    %832 = vmatprep.subr.mxu0 0.0
    %833 = vmatpush1.msra.mxu0 0.0
    %834 = vmatprep.subr.mxu0 0.0
    %835 = vmatpush1.msra.mxu0 0.0
    %836 = vmatprep.subr.mxu0 0.0
    %837 = vmatpush1.msra.mxu0 0.0
    %838 = vmatprep.subr.mxu0 0.0
    %839 = vmatpush1.msra.mxu0 0.0
    %840 = vmatprep.subr.mxu0 0.0
    %841 = vmatpush1.msra.mxu0 0.0
    %842 = vmatprep.subr.mxu0 0.0
    %843 = vmatpush1.msra.mxu0 0.0
    %844 = vmatprep.subr.mxu0 0.0
    %845 = vmatpush1.msra.mxu0 0.0
    %846 = vmatprep.subr.mxu0 0.0
    %847 = vmatpush1.msra.mxu0 0.0
    %848 = vmatprep.subr.mxu0 0.0
    %849 = vmatpush1.msra.mxu0 0.0
    %850 = vmatprep.subr.mxu0 0.0
    %851 = vmatpush1.msra.mxu0 0.0
    %852 = vmatprep.subr.mxu0 0.0
    %853 = vmatpush1.msra.mxu0 0.0
    %854 = vmatprep.subr.mxu0 0.0
    %855 = vmatpush1.msra.mxu0 0.0
    %856 = vmatprep.subr.mxu0 0.0
    %857 = vmatpush1.msra.mxu0 0.0
    %858 = vmatprep.subr.mxu0 0.0
    %859 = vmatpush1.msra.mxu0 0.0
    %860 = vmatprep.subr.mxu0 0.0
    %861 = vmatpush1.msra.mxu0 0.0
    %862 = vmatprep.subr.mxu0 0.0
    %863 = vmatpush1.msra.mxu0 0.0
    %864 = vmatprep.subr.mxu0 0.0
    %865 = vmatpush1.msra.mxu0 0.0
    %866 = vmatprep.subr.mxu0 0.0
    %867 = vmatpush1.msra.mxu0 0.0
    %868 = vmatprep.subr.mxu0 0.0
    %869 = vmatpush1.msra.mxu0 0.0
    %870 = vmatprep.subr.mxu0 0.0
    %871 = vmatpush1.msra.mxu0 0.0
    %872 = vmatprep.subr.mxu0 0.0
    %873 = vmatpush1.msra.mxu0 0.0
    %874 = vmatprep.subr.mxu0 0.0
    %875 = vmatpush1.msra.mxu0 0.0
    %876 = vmatprep.subr.mxu0 0.0
    %877 = vmatpush1.msra.mxu0 0.0
    %878 = vmatprep.subr.mxu0 0.0
    %879 = vmatpush1.msra.mxu0 0.0
    %880 = vmatprep.mubr.f32.mxu0 0.0
    %v881 = vand.u32 %v706, 4294901760
    %882 = vmatmul.mubr.f32.gmra.mrb[0].mxu0 %v881
    %v883 = vpop.f32.mrb[0].mxu0
    %v884 = vadd.f32 %v788, %v883
    %v885 = vpop.f32.mrb[0].mxu0
    %886 = vdwg.mxu0
    %887 = vmatprep.subr.mxu0 0.0
    %v888 = vand.u32 %v696, 4294901760
    %v889 = vsub.f32 %v696, %v888
    %890 = vmatpush1.msra.mxu0 %v889
    %891 = vmatprep.subr.mxu0 0.0
    %v892 = vand.u32 %v697, 4294901760
    %v893 = vsub.f32 %v697, %v892
    %894 = vmatpush1.msra.mxu0 %v893
    %895 = vmatprep.subr.mxu0 0.0
    %v896 = vand.u32 %v698, 4294901760
    %v897 = vsub.f32 %v698, %v896
    %898 = vmatpush1.msra.mxu0 %v897
    %899 = vmatprep.subr.mxu0 0.0
    %v900 = vand.u32 %v699, 4294901760
    %v901 = vsub.f32 %v699, %v900
    %902 = vmatpush1.msra.mxu0 %v901
    %903 = vmatprep.subr.mxu0 0.0
    %v904 = vand.u32 %v709, 4294901760
    %v905 = vsub.f32 %v709, %v904
    %906 = vmatpush1.msra.mxu0 %v905
    %907 = vmatprep.subr.mxu0 0.0
    %908 = vmatpush1.msra.mxu0 0.0
    %909 = vmatprep.subr.mxu0 0.0
    %910 = vmatpush1.msra.mxu0 0.0
    %911 = vmatprep.subr.mxu0 0.0
    %912 = vmatpush1.msra.mxu0 0.0
    %913 = vmatprep.subr.mxu0 0.0
    %914 = vmatpush1.msra.mxu0 0.0
    %915 = vmatprep.subr.mxu0 0.0
    %916 = vmatpush1.msra.mxu0 0.0
    %917 = vmatprep.subr.mxu0 0.0
    %918 = vmatpush1.msra.mxu0 0.0
    %919 = vmatprep.subr.mxu0 0.0
    %920 = vmatpush1.msra.mxu0 0.0
    %921 = vmatprep.subr.mxu0 0.0
    %922 = vmatpush1.msra.mxu0 0.0
    %923 = vmatprep.subr.mxu0 0.0
    %924 = vmatpush1.msra.mxu0 0.0
    %925 = vmatprep.subr.mxu0 0.0
    %926 = vmatpush1.msra.mxu0 0.0
    %927 = vmatprep.subr.mxu0 0.0
    %928 = vmatpush1.msra.mxu0 0.0
    %929 = vmatprep.subr.mxu0 0.0
    %930 = vmatpush1.msra.mxu0 0.0
    %931 = vmatprep.subr.mxu0 0.0
    %932 = vmatpush1.msra.mxu0 0.0
    %933 = vmatprep.subr.mxu0 0.0
    %934 = vmatpush1.msra.mxu0 0.0
    %935 = vmatprep.subr.mxu0 0.0
    %936 = vmatpush1.msra.mxu0 0.0
    %937 = vmatprep.subr.mxu0 0.0
    %938 = vmatpush1.msra.mxu0 0.0
    %939 = vmatprep.subr.mxu0 0.0
    %940 = vmatpush1.msra.mxu0 0.0
    %941 = vmatprep.subr.mxu0 0.0
    %942 = vmatpush1.msra.mxu0 0.0
    %943 = vmatprep.subr.mxu0 0.0
    %944 = vmatpush1.msra.mxu0 0.0
    %945 = vmatprep.subr.mxu0 0.0
    %946 = vmatpush1.msra.mxu0 0.0
    %947 = vmatprep.subr.mxu0 0.0
    %948 = vmatpush1.msra.mxu0 0.0
    %949 = vmatprep.subr.mxu0 0.0
    %950 = vmatpush1.msra.mxu0 0.0
    %951 = vmatprep.subr.mxu0 0.0
    %952 = vmatpush1.msra.mxu0 0.0
    %953 = vmatprep.subr.mxu0 0.0
    %954 = vmatpush1.msra.mxu0 0.0
    %955 = vmatprep.subr.mxu0 0.0
    %956 = vmatpush1.msra.mxu0 0.0
    %957 = vmatprep.subr.mxu0 0.0
    %958 = vmatpush1.msra.mxu0 0.0
    %959 = vmatprep.subr.mxu0 0.0
    %960 = vmatpush1.msra.mxu0 0.0
    %961 = vmatprep.mubr.f32.mxu0 0.0
    %v962 = vand.u32 %v706, 4294901760
    %v963 = vsub.f32 %v706, %v962
    %964 = vmatmul.mubr.f32.gmra.mrb[0].mxu0 %v963
    %v965 = vpop.f32.mrb[0].mxu0
    %v966 = vadd.f32 %v884, %v965
    %v967 = vpop.f32.mrb[0].mxu0
    %968 = vdwg.mxu0
    %969 = vmatprep.subr.mxu0 0.0
    %v970 = vand.u32 %v696, 4294901760
    %971 = vmatpush1.msra.mxu0 %v970
    %972 = vmatprep.subr.mxu0 0.0
    %v973 = vand.u32 %v697, 4294901760
    %974 = vmatpush1.msra.mxu0 %v973
    %975 = vmatprep.subr.mxu0 0.0
    %v976 = vand.u32 %v698, 4294901760
    %977 = vmatpush1.msra.mxu0 %v976
    %978 = vmatprep.subr.mxu0 0.0
    %v979 = vand.u32 %v699, 4294901760
    %980 = vmatpush1.msra.mxu0 %v979
    %981 = vmatprep.subr.mxu0 0.0
    %v982 = vand.u32 %v709, 4294901760
    %983 = vmatpush1.msra.mxu0 %v982
    %984 = vmatprep.subr.mxu0 0.0
    %985 = vmatpush1.msra.mxu0 0.0
    %986 = vmatprep.subr.mxu0 0.0
    %987 = vmatpush1.msra.mxu0 0.0
    %988 = vmatprep.subr.mxu0 0.0
    %989 = vmatpush1.msra.mxu0 0.0
    %990 = vmatprep.subr.mxu0 0.0
    %991 = vmatpush1.msra.mxu0 0.0
    %992 = vmatprep.subr.mxu0 0.0
    %993 = vmatpush1.msra.mxu0 0.0
    %994 = vmatprep.subr.mxu0 0.0
    %995 = vmatpush1.msra.mxu0 0.0
    %996 = vmatprep.subr.mxu0 0.0
    %997 = vmatpush1.msra.mxu0 0.0
    %998 = vmatprep.subr.mxu0 0.0
    %999 = vmatpush1.msra.mxu0 0.0
    %1000 = vmatprep.subr.mxu0 0.0
    %1001 = vmatpush1.msra.mxu0 0.0
    %1002 = vmatprep.subr.mxu0 0.0
    %1003 = vmatpush1.msra.mxu0 0.0
    %1004 = vmatprep.subr.mxu0 0.0
    %1005 = vmatpush1.msra.mxu0 0.0
    %1006 = vmatprep.subr.mxu0 0.0
    %1007 = vmatpush1.msra.mxu0 0.0
    %1008 = vmatprep.subr.mxu0 0.0
    %1009 = vmatpush1.msra.mxu0 0.0
    %1010 = vmatprep.subr.mxu0 0.0
    %1011 = vmatpush1.msra.mxu0 0.0
    %1012 = vmatprep.subr.mxu0 0.0
    %1013 = vmatpush1.msra.mxu0 0.0
    %1014 = vmatprep.subr.mxu0 0.0
    %1015 = vmatpush1.msra.mxu0 0.0
    %1016 = vmatprep.subr.mxu0 0.0
    %1017 = vmatpush1.msra.mxu0 0.0
    %1018 = vmatprep.subr.mxu0 0.0
    %1019 = vmatpush1.msra.mxu0 0.0
    %1020 = vmatprep.subr.mxu0 0.0
    %1021 = vmatpush1.msra.mxu0 0.0
    %1022 = vmatprep.subr.mxu0 0.0
    %1023 = vmatpush1.msra.mxu0 0.0
    %1024 = vmatprep.subr.mxu0 0.0
    %1025 = vmatpush1.msra.mxu0 0.0
    %1026 = vmatprep.subr.mxu0 0.0
    %1027 = vmatpush1.msra.mxu0 0.0
    %1028 = vmatprep.subr.mxu0 0.0
    %1029 = vmatpush1.msra.mxu0 0.0
    %1030 = vmatprep.subr.mxu0 0.0
    %1031 = vmatpush1.msra.mxu0 0.0
    %1032 = vmatprep.subr.mxu0 0.0
    %1033 = vmatpush1.msra.mxu0 0.0
    %1034 = vmatprep.subr.mxu0 0.0
    %1035 = vmatpush1.msra.mxu0 0.0
    %1036 = vmatprep.subr.mxu0 0.0
    %1037 = vmatpush1.msra.mxu0 0.0
    %1038 = vmatprep.mubr.f32.mxu0 0.0
    %v1039 = vand.u32 %v706, 4294901760
    %v1040 = vsub.f32 %v706, %v1039
    %v1041 = vand.u32 %v1040, 4294901760
    %1042 = vmatmul.mubr.f32.gmra.mrb[0].mxu0 %v1041
    %v1043 = vpop.f32.mrb[0].mxu0
    %v1044 = vadd.f32 %v966, %v1043
    %v1045 = vpop.f32.mrb[0].mxu0
    %1046 = vdwg.mxu0
    %1047 = vmatprep.subr.mxu0 0.0
    %v1048 = vand.u32 %v696, 4294901760
    %v1049 = vsub.f32 %v696, %v1048
    %v1050 = vand.u32 %v1049, 4294901760
    %1051 = vmatpush1.msra.mxu0 %v1050
    %1052 = vmatprep.subr.mxu0 0.0
    %v1053 = vand.u32 %v697, 4294901760
    %v1054 = vsub.f32 %v697, %v1053
    %v1055 = vand.u32 %v1054, 4294901760
    %1056 = vmatpush1.msra.mxu0 %v1055
    %1057 = vmatprep.subr.mxu0 0.0
    %v1058 = vand.u32 %v698, 4294901760
    %v1059 = vsub.f32 %v698, %v1058
    %v1060 = vand.u32 %v1059, 4294901760
    %1061 = vmatpush1.msra.mxu0 %v1060
    %1062 = vmatprep.subr.mxu0 0.0
    %v1063 = vand.u32 %v699, 4294901760
    %v1064 = vsub.f32 %v699, %v1063
    %v1065 = vand.u32 %v1064, 4294901760
    %1066 = vmatpush1.msra.mxu0 %v1065
    %1067 = vmatprep.subr.mxu0 0.0
    %v1068 = vand.u32 %v709, 4294901760
    %v1069 = vsub.f32 %v709, %v1068
    %v1070 = vand.u32 %v1069, 4294901760
    %1071 = vmatpush1.msra.mxu0 %v1070
    %1072 = vmatprep.subr.mxu0 0.0
    %1073 = vmatpush1.msra.mxu0 0.0
    %1074 = vmatprep.subr.mxu0 0.0
    %1075 = vmatpush1.msra.mxu0 0.0
    %1076 = vmatprep.subr.mxu0 0.0
    %1077 = vmatpush1.msra.mxu0 0.0
    %1078 = vmatprep.subr.mxu0 0.0
    %1079 = vmatpush1.msra.mxu0 0.0
    %1080 = vmatprep.subr.mxu0 0.0
    %1081 = vmatpush1.msra.mxu0 0.0
    %1082 = vmatprep.subr.mxu0 0.0
    %1083 = vmatpush1.msra.mxu0 0.0
    %1084 = vmatprep.subr.mxu0 0.0
    %1085 = vmatpush1.msra.mxu0 0.0
    %1086 = vmatprep.subr.mxu0 0.0
    %1087 = vmatpush1.msra.mxu0 0.0
    %1088 = vmatprep.subr.mxu0 0.0
    %1089 = vmatpush1.msra.mxu0 0.0
    %1090 = vmatprep.subr.mxu0 0.0
    %1091 = vmatpush1.msra.mxu0 0.0
    %1092 = vmatprep.subr.mxu0 0.0
    %1093 = vmatpush1.msra.mxu0 0.0
    %1094 = vmatprep.subr.mxu0 0.0
    %1095 = vmatpush1.msra.mxu0 0.0
    %1096 = vmatprep.subr.mxu0 0.0
    %1097 = vmatpush1.msra.mxu0 0.0
    %1098 = vmatprep.subr.mxu0 0.0
    %1099 = vmatpush1.msra.mxu0 0.0
    %1100 = vmatprep.subr.mxu0 0.0
    %1101 = vmatpush1.msra.mxu0 0.0
    %1102 = vmatprep.subr.mxu0 0.0
    %1103 = vmatpush1.msra.mxu0 0.0
    %1104 = vmatprep.subr.mxu0 0.0
    %1105 = vmatpush1.msra.mxu0 0.0
    %1106 = vmatprep.subr.mxu0 0.0
    %1107 = vmatpush1.msra.mxu0 0.0
    %1108 = vmatprep.subr.mxu0 0.0
    %1109 = vmatpush1.msra.mxu0 0.0
    %1110 = vmatprep.subr.mxu0 0.0
    %1111 = vmatpush1.msra.mxu0 0.0
    %1112 = vmatprep.subr.mxu0 0.0
    %1113 = vmatpush1.msra.mxu0 0.0
    %1114 = vmatprep.subr.mxu0 0.0
    %1115 = vmatpush1.msra.mxu0 0.0
    %1116 = vmatprep.subr.mxu0 0.0
    %1117 = vmatpush1.msra.mxu0 0.0
    %1118 = vmatprep.subr.mxu0 0.0
    %1119 = vmatpush1.msra.mxu0 0.0
    %1120 = vmatprep.subr.mxu0 0.0
    %1121 = vmatpush1.msra.mxu0 0.0
    %1122 = vmatprep.subr.mxu0 0.0
    %1123 = vmatpush1.msra.mxu0 0.0
    %1124 = vmatprep.subr.mxu0 0.0
    %1125 = vmatpush1.msra.mxu0 0.0
    %1126 = vmatprep.mubr.f32.mxu0 0.0
    %v1127 = vand.u32 %v706, 4294901760
    %1128 = vmatmul.mubr.f32.gmra.mrb[0].mxu0 %v1127
    %v1129 = vpop.f32.mrb[0].mxu0
    %v1130 = vadd.f32 %v1044, %v1129
    %v1131 = vpop.f32.mrb[0].mxu0
    %1132 = vdwg.mxu0
    %1133 = vmatprep.subr.mxu0 0.0
    %v1134 = vand.u32 %v696, 4294901760
    %1135 = vmatpush1.msra.mxu0 %v1134
    %1136 = vmatprep.subr.mxu0 0.0
    %v1137 = vand.u32 %v697, 4294901760
    %1138 = vmatpush1.msra.mxu0 %v1137
    %1139 = vmatprep.subr.mxu0 0.0
    %v1140 = vand.u32 %v698, 4294901760
    %1141 = vmatpush1.msra.mxu0 %v1140
    %1142 = vmatprep.subr.mxu0 0.0
    %v1143 = vand.u32 %v699, 4294901760
    %1144 = vmatpush1.msra.mxu0 %v1143
    %1145 = vmatprep.subr.mxu0 0.0
    %v1146 = vand.u32 %v709, 4294901760
    %1147 = vmatpush1.msra.mxu0 %v1146
    %1148 = vmatprep.subr.mxu0 0.0
    %1149 = vmatpush1.msra.mxu0 0.0
    %1150 = vmatprep.subr.mxu0 0.0
    %1151 = vmatpush1.msra.mxu0 0.0
    %1152 = vmatprep.subr.mxu0 0.0
    %1153 = vmatpush1.msra.mxu0 0.0
    %1154 = vmatprep.subr.mxu0 0.0
    %1155 = vmatpush1.msra.mxu0 0.0
    %1156 = vmatprep.subr.mxu0 0.0
    %1157 = vmatpush1.msra.mxu0 0.0
    %1158 = vmatprep.subr.mxu0 0.0
    %1159 = vmatpush1.msra.mxu0 0.0
    %1160 = vmatprep.subr.mxu0 0.0
    %1161 = vmatpush1.msra.mxu0 0.0
    %1162 = vmatprep.subr.mxu0 0.0
    %1163 = vmatpush1.msra.mxu0 0.0
    %1164 = vmatprep.subr.mxu0 0.0
    %1165 = vmatpush1.msra.mxu0 0.0
    %1166 = vmatprep.subr.mxu0 0.0
    %1167 = vmatpush1.msra.mxu0 0.0
    %1168 = vmatprep.subr.mxu0 0.0
    %1169 = vmatpush1.msra.mxu0 0.0
    %1170 = vmatprep.subr.mxu0 0.0
    %1171 = vmatpush1.msra.mxu0 0.0
    %1172 = vmatprep.subr.mxu0 0.0
    %1173 = vmatpush1.msra.mxu0 0.0
    %1174 = vmatprep.subr.mxu0 0.0
    %1175 = vmatpush1.msra.mxu0 0.0
    %1176 = vmatprep.subr.mxu0 0.0
    %1177 = vmatpush1.msra.mxu0 0.0
    %1178 = vmatprep.subr.mxu0 0.0
    %1179 = vmatpush1.msra.mxu0 0.0
    %1180 = vmatprep.subr.mxu0 0.0
    %1181 = vmatpush1.msra.mxu0 0.0
    %1182 = vmatprep.subr.mxu0 0.0
    %1183 = vmatpush1.msra.mxu0 0.0
    %1184 = vmatprep.subr.mxu0 0.0
    %1185 = vmatpush1.msra.mxu0 0.0
    %1186 = vmatprep.subr.mxu0 0.0
    %1187 = vmatpush1.msra.mxu0 0.0
    %1188 = vmatprep.subr.mxu0 0.0
    %1189 = vmatpush1.msra.mxu0 0.0
    %1190 = vmatprep.subr.mxu0 0.0
    %1191 = vmatpush1.msra.mxu0 0.0
    %1192 = vmatprep.subr.mxu0 0.0
    %1193 = vmatpush1.msra.mxu0 0.0
    %1194 = vmatprep.subr.mxu0 0.0
    %1195 = vmatpush1.msra.mxu0 0.0
    %1196 = vmatprep.subr.mxu0 0.0
    %1197 = vmatpush1.msra.mxu0 0.0
    %1198 = vmatprep.subr.mxu0 0.0
    %1199 = vmatpush1.msra.mxu0 0.0
    %1200 = vmatprep.subr.mxu0 0.0
    %1201 = vmatpush1.msra.mxu0 0.0
    %1202 = vmatprep.mubr.f32.mxu0 0.0
    %v1203 = vand.u32 %v706, 4294901760
    %1204 = vmatmul.mubr.f32.gmra.mrb[0].mxu0 %v1203
    %v1205 = vpop.f32.mrb[0].mxu0
    %v1206 = vadd.f32 %v1130, %v1205
    %v1207 = vpop.f32.mrb[0].mxu0
    %1208 = vdwg.mxu0
    %1209 = vst [vmem:[#allocation3] sm:$0x1] %v1206
    // Predicated region
    $region22: #{tpu_custom_call.1} parent=1 // pred_check
      _
    $region23: #{tpu_custom_call.1} parent=1 // pred_check_branch
      %1211 = sbr.rel (0) target = $region25
    $region24: #{tpu_custom_call.1} parent=1 // pred_region
      %s1213 = ssub.s32 16, 16
      %1214 = vsyncadd [#allocation4], %s1213
      %s1216 = sshll.u32 [#allocation3], 4
      %s1217 = int_to_ptr.vmem [resolvable:$true] %s1216
      %1219 = dma.vmem_to_hbm [thread:$0]  %s1217, 16, %s5, [#allocation4]
    $region25: #{tpu_custom_call.1} parent=1 // pred_fallthru
      _
    // Predicated region
    $region26: #{tpu_custom_call.1} parent=1 // pred_check
      _
    $region27: #{tpu_custom_call.1} parent=1 // pred_check_branch
      %1221 = sbr.rel (0) target = $region29
    $region28: #{tpu_custom_call.1} parent=1 // pred_region
      %1222 = dma.done [#allocation4], 16
    $region29: #{tpu_custom_call.1} parent=1 // pred_fallthru
      _
    %1223 = vsyncpa [#allocation4], 1

</llo_original>
